<compile_context>
chip_gen: v7x
topology: tpu7x:2x2x1
jax: 0.10.0
libtpu: 0.0.40
codegen_flags: <defaults>
</compile_context>

<pallas_src>
import functools

import jax
import jax.numpy as jnp
from jax import lax
from jax.experimental import pallas as pl
from jax.experimental.pallas import tpu as pltpu


def _cdiv(a: int, b: int) -> int:
    return -(-a // b)


def _round_up(x: int, m: int) -> int:
    return _cdiv(x, m) * m


def _tpu_generation() -> int:
    """Best-effort TPU generation (heuristics only; wrong guess is just slower)."""
    try:
        kind = jax.devices()[0].device_kind.lower()
    except Exception:
        return 6
    if "v7" in kind or "tpu7" in kind:
        return 7
    if "v6" in kind:
        return 6
    if "v5" in kind:
        return 5
    if "v4" in kind:
        return 4
    return 6


def _vmem_capacity_bytes() -> int:
    """Physical per-TensorCore VMEM; conservative fallback is v7x's 64 MiB."""
    try:
        cap = getattr(pltpu.get_tpu_info(), "vmem_capacity_bytes", None)
        if cap:
            return int(cap)
    except Exception:
        pass
    return 64 << 20


def _normalize_and_store(rows, out_ref, normalize: bool):
    """Batched L2 norm (torch F.normalize(p=2, dim=-1, eps=1e-12)) + one store."""
    if normalize:
        if rows.dtype != jnp.float32:          # no redundant cast when already f32
            rows = rows.astype(jnp.float32)
        # One cross-lane reduce over the whole (tile_n, D) tile (XLU) and one
        # batched rsqrt (EUP); both sit in VLIW slots separate from the VPU mul.
        sq = jnp.sum(rows * rows, axis=-1, keepdims=True)
        inv = lax.rsqrt(jnp.maximum(sq, jnp.float32(1e-24)))  # == 1/max(||v||,1e-12)
        rows = rows * inv
    if rows.dtype != out_ref.dtype:
        rows = rows.astype(out_ref.dtype)
    out_ref[...] = rows                        # single sublane-full, lane-dense store


# --------------------------------------------------------------------------- #
# Resident fast path: table lives in VMEM, lookup is an exact one-hot matmul. #
# --------------------------------------------------------------------------- #
def _resident_onehot_kernel(idx_ref, table_ref, out_ref, *, normalize, precision):
    # idx_ref:   (tile_n, 1) int32 entity ids for this tile           (VMEM)
    # table_ref: (E, D) full entity-embedding table, VMEM-resident    (VMEM)
    # out_ref:   (tile_n, D) output tile                              (VMEM)
    idx = idx_ref[...]                                     # (T, 1)
    tile_rows = idx.shape[0]
    num_entities = table_ref.shape[0]
    onehot = (idx == lax.broadcasted_iota(jnp.int32, (tile_rows, num_entities), 1)
              ).astype(table_ref.dtype)
    # NOTE: out-of-range entity ids yield an all-zero row on this path.
    rows = jnp.dot(onehot, table_ref[...],
                   preferred_element_type=jnp.float32,
                   precision=precision)
    _normalize_and_store(rows, out_ref, normalize)


def _resident_gather_call(flat_idx, emb_table, *, normalize, out_dtype, tile_n,
                          vmem_budget, phys_vmem):
    n = flat_idx.shape[0]
    num_entities, emb_dim = emb_table.shape
    num_chunks = _cdiv(n, tile_n)
    n_pad = num_chunks * tile_n
    if n_pad != n:
        flat_idx = jnp.pad(flat_idx, (0, n_pad - n))       # pad with entity 0 (valid)

    # HIGHEST only where it matters: 1.0 x bf16 product with f32 accumulation is
    # already exact, so bf16 tables run the native-rate MXU path.
    precision = (lax.Precision.HIGHEST
                 if jnp.dtype(emb_table.dtype) == jnp.float32 else None)
    vmem_limit = int(min(max(vmem_budget, 32 << 20), phys_vmem * 3 // 4))

    out = pl.pallas_call(
        functools.partial(_resident_onehot_kernel, normalize=normalize,
                          precision=precision),
        out_shape=jax.ShapeDtypeStruct((n_pad, emb_dim), out_dtype),
        grid=(num_chunks,),
        in_specs=[
            pl.BlockSpec((tile_n, 1), lambda c: (c, 0)),   # per-tile index column
            # Whole table placed in VMEM once (single copy, no per-step
            # pipelining / double-buffering) -> halves the resident footprint
            # vs. a blocked spec, which matters on v7x's 64 MiB VMEM.
            pl.BlockSpec(memory_space=pltpu.MemorySpace.VMEM),
        ],
        out_specs=pl.BlockSpec((tile_n, emb_dim), lambda c: (c, 0)),
        compiler_params=pltpu.CompilerParams(
            dimension_semantics=("parallel",),
            vmem_limit_bytes=vmem_limit),
    )(flat_idx.reshape(n_pad, 1), emb_table)
    return out[:n]


# --------------------------------------------------------------------------- #
# Large-table path: table stays in HBM, per-row async-DMA gather,             #
# double-buffered so the next tile's DMAs overlap this tile's normalize/store.#
# --------------------------------------------------------------------------- #
def _dma_gather_kernel(idx_ref, table_hbm, out_ref, gbuf, sem, *,
                       normalize, n_valid, tile_n, chunks_per_outer):
    # idx_ref:   (N_pad,) int32 entity ids, scalar-prefetched          (SMEM)
    # table_hbm: (E, D) entity-embedding table                         (HBM, pl.ANY)
    # out_ref:   (tile_n, D) output tile                               (VMEM)
    # gbuf:      (2, tile_n, D) double-buffered gather scratch         (VMEM)
    # sem:       (2,) DMA semaphores, one per gbuf slot
    o = pl.program_id(0)
    i = pl.program_id(1)
    chunk = o * chunks_per_outer + i

    def issue_tile(chunk_idx, slot):
        base = chunk_idx * tile_n

        def issue4(r4, carry):                 # manual unroll x4: SMEM index reads
            for u in range(4):                 # co-issue with descriptor pushes
                row = r4 * 4 + u

                @pl.when(base + row < n_valid)  # skip padded-tail rows entirely
                def _():
                    e = idx_ref[base + row]     # indices assumed in [0, E)
                    pltpu.make_async_copy(
                        table_hbm.at[e], gbuf.at[slot, row], sem.at[slot]).start()
            return carry

        lax.fori_loop(0, tile_n // 4, issue4, 0)

    # Prime: the first inner step of each (per-core) outer slice issues its own
    # tile, so splitting the outer axis across TensorCores stays correct.
    @pl.when(i == 0)
    def _():
        issue_tile(chunk, 0)

    # Prefetch the next tile's rows into the other slot BEFORE draining this
    # one: normalize + writeback of tile `chunk` hide behind tile c+1's DMAs.
    @pl.when(i + 1 < chunks_per_outer)
    def _():
        issue_tile(chunk + 1, (i + 1) % 2)

    slot = i % 2
    base = chunk * tile_n

    def drain1(r, carry):
        @pl.when(base + r < n_valid)           # must mirror the issue guard exactly
        def _():
            # Stand-in source row 0 is fine: every row copy moves identical byte
            # counts, so the semaphore accounting balances.
            pltpu.make_async_copy(
                table_hbm.at[0], gbuf.at[slot, r], sem.at[slot]).wait()
        return carry

    lax.fori_loop(0, tile_n, drain1, 0)

    _normalize_and_store(gbuf[slot], out_ref, normalize)


def _dma_gather_call(flat_idx, emb_table, *, normalize, out_dtype, tile_n, phys_vmem):
    n = flat_idx.shape[0]
    num_entities, emb_dim = emb_table.shape
    table_dtype = jnp.dtype(emb_table.dtype)

    num_chunks = _cdiv(n, tile_n)
    # Outer "parallel" axis lets v7x's two TensorCores split the grid while the
    # inner "arbitrary" axis carries the double-buffer prefetch chain.
    num_outer = 2 if num_chunks >= 8 else 1
    num_chunks = _round_up(num_chunks, num_outer)
    chunks_per_outer = num_chunks // num_outer
    n_pad = num_chunks * tile_n
    if n_pad != n:
        flat_idx = jnp.pad(flat_idx, (0, n_pad - n))

    needed = (2 * tile_n * emb_dim * table_dtype.itemsize   # double-buffered gbuf
              + 2 * tile_n * emb_dim * out_dtype.itemsize   # double-buffered out tile
              + 2 * tile_n * emb_dim * 4                    # f32 working rows
              + (4 << 20))                                  # headroom
    vmem_limit = int(min(max(needed, 32 << 20), phys_vmem * 3 // 4))

    out = pl.pallas_call(
        functools.partial(_dma_gather_kernel, normalize=normalize, n_valid=n,
                          tile_n=tile_n, chunks_per_outer=chunks_per_outer),
        out_shape=jax.ShapeDtypeStruct((n_pad, emb_dim), out_dtype),
        grid_spec=pltpu.PrefetchScalarGridSpec(
            num_scalar_prefetch=1,
            grid=(num_outer, chunks_per_outer),
            in_specs=[pl.BlockSpec(memory_space=pl.ANY)],   # table stays in HBM
            out_specs=pl.BlockSpec(
                (tile_n, emb_dim),
                lambda o, i, idx: (o * chunks_per_outer + i, 0)),
            scratch_shapes=[
                pltpu.VMEM((2, tile_n, emb_dim), emb_table.dtype),
                pltpu.SemaphoreType.DMA((2,)),
            ]),
        compiler_params=pltpu.CompilerParams(
            dimension_semantics=("parallel", "arbitrary"),
            vmem_limit_bytes=vmem_limit),
    )(flat_idx, emb_table)
    return out[:n]


# --------------------------------------------------------------------------- #
# Public wrapper.                                                             #
# --------------------------------------------------------------------------- #
def entity_emb_forward(entity_indices, emb_table, *, normalize=True,
                       out_dtype=None, tile_rows=None, force_dma_gather=False):
    """entity_indices: (B, M) int in [0, E), emb_table: (E, D) -> (B, M, D).

    out_dtype: optionally emit e.g. bfloat16 to halve writeback traffic
    (normalization math stays in f32 regardless).
    """
    batch, num_aliases = entity_indices.shape
    num_entities, emb_dim = emb_table.shape
    table_dtype = jnp.dtype(emb_table.dtype)
    out_dtype = table_dtype if out_dtype is None else jnp.dtype(out_dtype)

    gen = _tpu_generation()
    phys_vmem = _vmem_capacity_bytes()

    if tile_rows is None:
        # 256-row tiles feed the 256-wide MXU on v6e/v7x and halve per-step
        # overhead; keep 128 on v5e (128-wide MXU, no native f32 VPU).
        tile_rows = 256 if gen >= 6 else 128

    n = batch * num_aliases
    # Round tiles to the packed-dtype sublane multiple (8 for 32-bit, 16 for
    # bf16, 32 for 1-byte) so small-N stores stay unmasked.
    sublane = max(8, 32 // out_dtype.itemsize, 32 // table_dtype.itemsize)
    tile_n = _round_up(min(tile_rows, max(n, 1)), sublane)

    flat_idx = entity_indices.reshape(-1).astype(jnp.int32)

    is_f32_table = table_dtype == jnp.float32
    # On v5e (197 TF/s peak, f32 via multi-pass HIGHEST) the one-hot matmul
    # stops beating the DMA gather much sooner than on v6e/v7x.
    onehot_max_rows = 1024 if (is_f32_table and gen <= 5) else 4096

    table_bytes = num_entities * emb_dim * table_dtype.itemsize
    out_tile_bytes = tile_n * emb_dim * out_dtype.itemsize
    resident_needed = (table_bytes                                    # single VMEM copy
                       + tile_n * num_entities * table_dtype.itemsize # one-hot intermediate
                       + 2 * out_tile_bytes                           # double-buffered out tiles
                       + 2 * tile_n * 4                               # double-buffered index column
                       + 2 * tile_n * emb_dim * 4                     # f32 gathered rows
                       + (4 << 20))                                   # headroom
    use_resident = (not force_dma_gather
                    and num_entities <= onehot_max_rows
                    and table_bytes <= phys_vmem // 2
                    and resident_needed <= phys_vmem * 3 // 4)

    if use_resident:
        out_flat = _resident_gather_call(
            flat_idx, emb_table, normalize=normalize, out_dtype=out_dtype,
            tile_n=tile_n, vmem_budget=resident_needed, phys_vmem=phys_vmem)
    else:
        # Cap the scalar-prefetched index slab per call (1-D SMEM pads to
        # next_pow2(4N) bytes); chunk host-side for very large B*M.
        max_idx_per_call = 32768
        if n <= max_idx_per_call:
            out_flat = _dma_gather_call(
                flat_idx, emb_table, normalize=normalize, out_dtype=out_dtype,
                tile_n=tile_n, phys_vmem=phys_vmem)
        else:
            parts = []
            for s in range(0, n, max_idx_per_call):
                parts.append(_dma_gather_call(
                    flat_idx[s:s + max_idx_per_call], emb_table,
                    normalize=normalize, out_dtype=out_dtype,
                    tile_n=tile_n, phys_vmem=phys_vmem))
            out_flat = jnp.concatenate(parts, axis=0)

    return out_flat.reshape(batch, num_aliases, emb_dim)


if __name__ == "__main__":
    key = jax.random.PRNGKey(0)
    k_table, k_idx, k_idx2 = jax.random.split(key, 3)

    # Small shapes consistent with the module: 64 entities, emb_dim=256
    # (lane-aligned), batch=2 sentences, M=8 candidate aliases per sentence.
    num_entities, emb_dim = 64, 256
    batch, num_aliases = 2, 8

    emb_table = jax.random.normal(k_table, (num_entities, emb_dim), dtype=jnp.float32)
    entity_indices = jax.random.randint(
        k_idx, (batch, num_aliases), 0, num_entities, dtype=jnp.int32)

    # Pure-JAX reference (torch F.normalize(p=2, dim=-1) semantics).
    def ref_fwd(idx, norm=True):
        g = emb_table[idx]
        if not norm:
            return g
        nrm = jnp.sqrt(jnp.sum(g * g, axis=-1, keepdims=True))
        return g / jnp.maximum(nrm, 1e-12)

    ref = ref_fwd(entity_indices)
    gathered = ref_fwd(entity_indices, norm=False)

    # 1) Resident fast path (table in VMEM, one-hot MXU gather).
    out_resident = jax.block_until_ready(
        entity_emb_forward(entity_indices, emb_table, normalize=True))
    assert out_resident.shape == (batch, num_aliases, emb_dim), out_resident.shape
    assert out_resident.dtype == emb_table.dtype
    assert jnp.allclose(out_resident, ref, atol=1e-5, rtol=1e-5), "resident path mismatch"

    # 2) Large-table path (table in HBM, double-buffered per-row async-DMA gather).
    out_dma = jax.block_until_ready(
        entity_emb_forward(entity_indices, emb_table, normalize=True,
                           force_dma_gather=True))
    assert jnp.allclose(out_dma, ref, atol=1e-5, rtol=1e-5), "DMA-gather path mismatch"

    # 3) normalize=False (subclasses may disable the L2 norm).
    out_raw = jax.block_until_ready(
        entity_emb_forward(entity_indices, emb_table, normalize=False))
    assert jnp.allclose(out_raw, gathered, atol=1e-5, rtol=1e-5), "raw gather mismatch"

    # 4) DMA path with multiple tiles, a 2-wide outer axis, padded tail, and a
    #    fully padded final tile — exercises the prime/prefetch/slot logic.
    idx2 = jax.random.randint(k_idx2, (8, 11), 0, num_entities, dtype=jnp.int32)
    ref2 = ref_fwd(idx2)
    out_dma2 = jax.block_until_ready(
        entity_emb_forward(idx2, emb_table, normalize=True,
                           force_dma_gather=True, tile_rows=8))
    assert out_dma2.shape == (8, 11, emb_dim), out_dma2.shape
    assert jnp.allclose(out_dma2, ref2, atol=1e-5, rtol=1e-5), "double-buffered DMA mismatch"

    print("KERNEL_OK")
</pallas_src>

<mosaic_0001>
module attributes {stable_mosaic.version = 11 : i64} {
  func.func @_resident_onehot_kernel(%arg0: i32, %arg1: memref<16x1xi32, #tpu.memory_space<vmem>>, %arg2: memref<64x256xf32, #tpu.memory_space<vmem>>, %arg3: memref<16x256xf32, #tpu.memory_space<vmem>>) attributes {dimension_semantics = [#tpu.dimension_semantics<parallel>], iteration_bounds = array<i64: 1>, scalar_prefetch = 0 : i64, scratch_operands = 0 : i64, tpu.core_type = #tpu.core_type<tc>, window_params = [{transform_indices = @transform_0, window_bounds = array<i64: 16, 1>}, {pipeline_mode = #tpu.pipeline_mode<synchronous>, transform_indices = @transform_1, window_bounds = array<i64: 64, 256>}, {transform_indices = @transform_2, window_bounds = array<i64: 16, 256>}]} {
    %c0 = arith.constant 0 : index
    %c0_0 = arith.constant 0 : index
    %0 = vector.load %arg1[%c0, %c0_0] : memref<16x1xi32, #tpu.memory_space<vmem>>, vector<16x1xi32>
    %1 = tpu.iota {dimensions = array<i32: 1>} : vector<16x64xi32>
    %2 = vector.broadcast %0 : vector<16x1xi32> to vector<16x64xi32>
    %3 = arith.cmpi eq, %2, %1 : vector<16x64xi32>
    %4 = arith.extui %3 : vector<16x64xi1> to vector<16x64xi32>
    %5 = arith.sitofp %4 : vector<16x64xi32> to vector<16x64xf32>
    %c0_1 = arith.constant 0 : index
    %c0_2 = arith.constant 0 : index
    %6 = vector.load %arg2[%c0_1, %c0_2] : memref<64x256xf32, #tpu.memory_space<vmem>>, vector<64x256xf32>
    %cst = arith.constant dense<0.000000e+00> : vector<16x256xf32>
    %7 = tpu.matmul %5, %6, %cst {dimension_numbers = #tpu.dot_dimension_numbers<[1], [0], [0], [1], [0, 0, 1, 1], [], []>, precision = #tpu.contract_precision<fp32>} : vector<16x64xf32>, vector<64x256xf32>, vector<16x256xf32> -> vector<16x256xf32>
    %8 = arith.mulf %7, %7 : vector<16x256xf32>
    %cst_3 = arith.constant dense<0.000000e+00> : vector<16xf32>
    %9 = vector.multi_reduction <add>, %8, %cst_3 [1] : vector<16x256xf32> to vector<16xf32>
    %10 = vector.shape_cast %9 : vector<16xf32> to vector<16x1xf32>
    %cst_4 = arith.constant 1.000000e-24 : f32
    %11 = vector.broadcast %cst_4 : f32 to vector<16x1xf32>
    %12 = arith.maximumf %10, %11 : vector<16x1xf32>
    %13 = math.rsqrt %12 : vector<16x1xf32>
    %14 = vector.broadcast %13 : vector<16x1xf32> to vector<16x256xf32>
    %15 = arith.mulf %7, %14 : vector<16x256xf32>
    %c0_5 = arith.constant 0 : index
    %c0_6 = arith.constant 0 : index
    %16 = vector.load %arg3[%c0_5, %c0_6] : memref<16x256xf32, #tpu.memory_space<vmem>>, vector<16x256xf32>
    tpu.vector_store %arg3[%c0_5, %c0_6], %15 {strides = array<i32>} : memref<16x256xf32, #tpu.memory_space<vmem>>, vector<16x256xf32>,
    return
  }
  func.func @transform_0(%arg0: i32) -> (i32, i32) {
    %c0_i32 = arith.constant 0 : i32
    %c0_i32_0 = arith.constant 0 : i32
    return %arg0, %c0_i32 : i32, i32
  }
  func.func @transform_1(%arg0: i32) -> (i32, i32) {
    %c0_i32 = arith.constant 0 : i32
    %c0_i32_0 = arith.constant 0 : i32
    %c0_i32_1 = arith.constant 0 : i32
    return %c0_i32, %c0_i32_0 : i32, i32
  }
  func.func @transform_2(%arg0: i32) -> (i32, i32) {
    %c0_i32 = arith.constant 0 : i32
    %c0_i32_0 = arith.constant 0 : i32
    return %arg0, %c0_i32 : i32, i32
  }
}

</mosaic_0001>

<llo_original>
// kernel: tpu_custom_call.1
$region0: #{tpu_custom_call.1}
  #allocation0 [shape = 'u32[]', space=smem, size = 0x4, offset = 0x4, fixed_abs, tag = 'smem constant byte address 0x4 - core index']
  #allocation1 [shape = 'u32[144,128]{1,0:T(1,128)}', space=vmem, size = 0x12000, scoped, tag = 'internal scratch']
  %s0 = inlined_call_operand.vmem [shape: s32[16,1], index: 0, kind: input, shape index: {}]
  %s1 = inlined_call_operand.hbm [shape: f32[64,256], index: 1, kind: input, shape index: {}]
  %s2 = inlined_call_operand.hbm [shape: f32[16,256], index: 2, kind: output, shape index: {}]
  %s3 = sld [smem:[#allocation0]]
  $region22: #{tpu_custom_call.1} parent=0
    _
  %s5 = ssub.s32 1, %s3
  %s6 = scalar_select 0, %s5, %s3
  $region1: #{tpu_custom_call.1} parent=0
    #allocation2 [shape = 'u8[65536]{0}', space=vmem, size = 0x10000, scoped, tag = 'input window, operand 1, single buffered']
    #allocation3 [shape = 's32[1]{0}', space=sflag, size = 0x4, scoped, tag = 'scoped memory for tpu_custom_call.1']
    #allocation4 [shape = 's32[1]{0}', space=sflag, size = 0x4, scoped, tag = 'scoped memory for tpu_custom_call.1']
    #allocation5 [shape = 'u8[16384]{0}', space=vmem, size = 0x4000, scoped, tag = 'output window, operand 0, single buffered']
    %7 = vsyncpa [#allocation3], 0
    %8 = vsyncpa [#allocation4], 0
    // Predicated region
    $region2: #{tpu_custom_call.1} parent=1 // pred_check
      _
    $region3: #{tpu_custom_call.1} parent=1 // pred_check_branch
      %10 = sbr.rel (0) target = $region5
    $region4: #{tpu_custom_call.1} parent=1 // pred_region
      _
    $region5: #{tpu_custom_call.1} parent=1 // pred_fallthru
      _
    // Predicated region
    $region6: #{tpu_custom_call.1} parent=1 // pred_check
      _
    $region7: #{tpu_custom_call.1} parent=1 // pred_check_branch
      %12 = sbr.rel (0) target = $region9
    $region8: #{tpu_custom_call.1} parent=1 // pred_region
      %s14 = ssub.s32 2048, 2048
      %15 = vsyncadd [#allocation3], %s14
      %s16 = sshll.u32 [#allocation2], 4
      %s17 = int_to_ptr.vmem [resolvable:$true] %s16
      %22 = dma.hbm_to_vmem [thread:$0]  %s1, 2048, %s17, [#allocation3], 256, 256, 16
    $region9: #{tpu_custom_call.1} parent=1 // pred_fallthru
      _
    // Predicated region
    $region10: #{tpu_custom_call.1} parent=1 // pred_check
      _
    $region11: #{tpu_custom_call.1} parent=1 // pred_check_branch
      %24 = sbr.rel (0) target = $region13
    $region12: #{tpu_custom_call.1} parent=1 // pred_region
      %25 = dma.done [#allocation3], 2048
    $region13: #{tpu_custom_call.1} parent=1 // pred_fallthru
      _
    %v26 = vld [vmem:[%s0] sm:$0xff]
    %v27 = vld [vmem:[%s0 + $0x8] sm:$0xff]
    %v28 = vlaneseq
    %v29 = vand.u32 %v28, 127
    %30 = vset.pattern.permute.xlu0 0
    %31 = vperm.xlu0 %30, %v26
    %v32 = vpop.permute.xlu0 %31
    %33 = vset.pattern.permute.xlu0 0
    %34 = vperm.xlu0 %33, %v27
    %v35 = vpop.permute.xlu0 %34
    %vm36 = vcmp.eq.s32.totalorder %v32, %v29
    %vm37 = vcmp.eq.s32.totalorder %v35, %v29
    %v38 = vsel %vm36, 1, 0
    %v39 = vsel %vm37, 1, 0
    %v40 = vcvt.s32.f32 %v38
    %v41 = vcvt.s32.f32 %v39
    %v42 = vld [vmem:[#allocation2] sm:$0xff]
    %v43 = vld [vmem:[#allocation2 + $0x8] sm:$0xff]
    %v44 = vld [vmem:[#allocation2 + $0x10] sm:$0xff]
    %v45 = vld [vmem:[#allocation2 + $0x18] sm:$0xff]
    %v46 = vld [vmem:[#allocation2 + $0x20] sm:$0xff]
    %v47 = vld [vmem:[#allocation2 + $0x28] sm:$0xff]
    %v48 = vld [vmem:[#allocation2 + $0x30] sm:$0xff]
    %v49 = vld [vmem:[#allocation2 + $0x38] sm:$0xff]
    %v50 = vld [vmem:[#allocation2 + $0x40] sm:$0xff]
    %v51 = vld [vmem:[#allocation2 + $0x48] sm:$0xff]
    %v52 = vld [vmem:[#allocation2 + $0x50] sm:$0xff]
    %v53 = vld [vmem:[#allocation2 + $0x58] sm:$0xff]
    %v54 = vld [vmem:[#allocation2 + $0x60] sm:$0xff]
    %v55 = vld [vmem:[#allocation2 + $0x68] sm:$0xff]
    %v56 = vld [vmem:[#allocation2 + $0x70] sm:$0xff]
    %v57 = vld [vmem:[#allocation2 + $0x78] sm:$0xff]
    %vm58 = vcmask 523264
    %v60 = vsel %vm58, %v40, 0
    %v63 = vsel %vm58, %v41, 0
    %v65 = vand.u32 %v43, 4294901760
    %66 = vmatprep.subr.mxu0 %v65
    %v67 = vand.u32 %v42, 4294901760
    %68 = vmatpush1.msra.mxu0 %v67
    %v69 = vand.u32 %v45, 4294901760
    %70 = vmatprep.subr.mxu0 %v69
    %v71 = vand.u32 %v44, 4294901760
    %72 = vmatpush1.msra.mxu0 %v71
    %v73 = vand.u32 %v47, 4294901760
    %74 = vmatprep.subr.mxu0 %v73
    %v75 = vand.u32 %v46, 4294901760
    %76 = vmatpush1.msra.mxu0 %v75
    %v77 = vand.u32 %v49, 4294901760
    %78 = vmatprep.subr.mxu0 %v77
    %v79 = vand.u32 %v48, 4294901760
    %80 = vmatpush1.msra.mxu0 %v79
    %v81 = vand.u32 %v51, 4294901760
    %82 = vmatprep.subr.mxu0 %v81
    %v83 = vand.u32 %v50, 4294901760
    %84 = vmatpush1.msra.mxu0 %v83
    %v85 = vand.u32 %v53, 4294901760
    %86 = vmatprep.subr.mxu0 %v85
    %v87 = vand.u32 %v52, 4294901760
    %88 = vmatpush1.msra.mxu0 %v87
    %v89 = vand.u32 %v55, 4294901760
    %90 = vmatprep.subr.mxu0 %v89
    %v91 = vand.u32 %v54, 4294901760
    %92 = vmatpush1.msra.mxu0 %v91
    %v93 = vand.u32 %v57, 4294901760
    %94 = vmatprep.subr.mxu0 %v93
    %v95 = vand.u32 %v56, 4294901760
    %96 = vmatpush1.msra.mxu0 %v95
    %97 = vmatprep.subr.mxu0 0.0
    %98 = vmatpush1.msra.mxu0 0.0
    %99 = vmatprep.subr.mxu0 0.0
    %100 = vmatpush1.msra.mxu0 0.0
    %101 = vmatprep.subr.mxu0 0.0
    %102 = vmatpush1.msra.mxu0 0.0
    %103 = vmatprep.subr.mxu0 0.0
    %104 = vmatpush1.msra.mxu0 0.0
    %105 = vmatprep.subr.mxu0 0.0
    %106 = vmatpush1.msra.mxu0 0.0
    %107 = vmatprep.subr.mxu0 0.0
    %108 = vmatpush1.msra.mxu0 0.0
    %109 = vmatprep.subr.mxu0 0.0
    %110 = vmatpush1.msra.mxu0 0.0
    %111 = vmatprep.subr.mxu0 0.0
    %112 = vmatpush1.msra.mxu0 0.0
    %113 = vmatprep.subr.mxu0 0.0
    %114 = vmatpush1.msra.mxu0 0.0
    %115 = vmatprep.subr.mxu0 0.0
    %116 = vmatpush1.msra.mxu0 0.0
    %117 = vmatprep.subr.mxu0 0.0
    %118 = vmatpush1.msra.mxu0 0.0
    %119 = vmatprep.subr.mxu0 0.0
    %120 = vmatpush1.msra.mxu0 0.0
    %121 = vmatprep.subr.mxu0 0.0
    %122 = vmatpush1.msra.mxu0 0.0
    %123 = vmatprep.subr.mxu0 0.0
    %124 = vmatpush1.msra.mxu0 0.0
    %125 = vmatprep.subr.mxu0 0.0
    %126 = vmatpush1.msra.mxu0 0.0
    %127 = vmatprep.subr.mxu0 0.0
    %128 = vmatpush1.msra.mxu0 0.0
    %129 = vmatprep.subr.mxu0 0.0
    %130 = vmatpush1.msra.mxu0 0.0
    %131 = vmatprep.subr.mxu0 0.0
    %132 = vmatpush1.msra.mxu0 0.0
    %133 = vmatprep.subr.mxu0 0.0
    %134 = vmatpush1.msra.mxu0 0.0
    %135 = vmatprep.subr.mxu0 0.0
    %136 = vmatpush1.msra.mxu0 0.0
    %137 = vmatprep.subr.mxu0 0.0
    %138 = vmatpush1.msra.mxu0 0.0
    %139 = vmatprep.subr.mxu0 0.0
    %140 = vmatpush1.msra.mxu0 0.0
    %141 = vmatprep.subr.mxu0 0.0
    %142 = vmatpush1.msra.mxu0 0.0
    %143 = vmatprep.subr.mxu0 0.0
    %144 = vmatpush1.msra.mxu0 0.0
    %145 = vmatprep.mubr.f32.mxu0 0.0
    %v146 = vand.u32 %v60, 4294901760
    %v147 = vsub.f32 %v60, %v146
    %v148 = vand.u32 %v147, 4294901760
    %v149 = vsub.f32 %v147, %v148
    %v150 = vand.u32 %v149, 4294901760
    %151 = vmatmul.mubr.f32.gmra.mrb[0].mxu0 %v150
    %v152 = vpop.f32.mrb[0].mxu0
    %v153 = vadd.f32 0.0, %v152
    %v154 = vpop.f32.mrb[0].mxu0
    %v155 = vadd.f32 0.0, %v154
    %156 = vmatprep.mubr.f32.mxu0 0.0
    %v157 = vand.u32 %v63, 4294901760
    %v158 = vsub.f32 %v63, %v157
    %v159 = vand.u32 %v158, 4294901760
    %v160 = vsub.f32 %v158, %v159
    %v161 = vand.u32 %v160, 4294901760
    %162 = vmatmul.mubr.f32.gmra.mrb[0].mxu0 %v161
    %v163 = vpop.f32.mrb[0].mxu0
    %v164 = vadd.f32 0.0, %v163
    %v165 = vpop.f32.mrb[0].mxu0
    %v166 = vadd.f32 0.0, %v165
    %167 = vdwg.mxu0
    %v168 = vand.u32 %v43, 4294901760
    %v169 = vsub.f32 %v43, %v168
    %v170 = vand.u32 %v169, 4294901760
    %v171 = vsub.f32 %v169, %v170
    %v172 = vand.u32 %v171, 4294901760
    %173 = vmatprep.subr.mxu0 %v172
    %v174 = vand.u32 %v42, 4294901760
    %v175 = vsub.f32 %v42, %v174
    %v176 = vand.u32 %v175, 4294901760
    %v177 = vsub.f32 %v175, %v176
    %v178 = vand.u32 %v177, 4294901760
    %179 = vmatpush1.msra.mxu0 %v178
    %v180 = vand.u32 %v45, 4294901760
    %v181 = vsub.f32 %v45, %v180
    %v182 = vand.u32 %v181, 4294901760
    %v183 = vsub.f32 %v181, %v182
    %v184 = vand.u32 %v183, 4294901760
    %185 = vmatprep.subr.mxu0 %v184
    %v186 = vand.u32 %v44, 4294901760
    %v187 = vsub.f32 %v44, %v186
    %v188 = vand.u32 %v187, 4294901760
    %v189 = vsub.f32 %v187, %v188
    %v190 = vand.u32 %v189, 4294901760
    %191 = vmatpush1.msra.mxu0 %v190
    %v192 = vand.u32 %v47, 4294901760
    %v193 = vsub.f32 %v47, %v192
    %v194 = vand.u32 %v193, 4294901760
    %v195 = vsub.f32 %v193, %v194
    %v196 = vand.u32 %v195, 4294901760
    %197 = vmatprep.subr.mxu0 %v196
    %v198 = vand.u32 %v46, 4294901760
    %v199 = vsub.f32 %v46, %v198
    %v200 = vand.u32 %v199, 4294901760
    %v201 = vsub.f32 %v199, %v200
    %v202 = vand.u32 %v201, 4294901760
    %203 = vmatpush1.msra.mxu0 %v202
    %v204 = vand.u32 %v49, 4294901760
    %v205 = vsub.f32 %v49, %v204
    %v206 = vand.u32 %v205, 4294901760
    %v207 = vsub.f32 %v205, %v206
    %v208 = vand.u32 %v207, 4294901760
    %209 = vmatprep.subr.mxu0 %v208
    %v210 = vand.u32 %v48, 4294901760
    %v211 = vsub.f32 %v48, %v210
    %v212 = vand.u32 %v211, 4294901760
    %v213 = vsub.f32 %v211, %v212
    %v214 = vand.u32 %v213, 4294901760
    %215 = vmatpush1.msra.mxu0 %v214
    %v216 = vand.u32 %v51, 4294901760
    %v217 = vsub.f32 %v51, %v216
    %v218 = vand.u32 %v217, 4294901760
    %v219 = vsub.f32 %v217, %v218
    %v220 = vand.u32 %v219, 4294901760
    %221 = vmatprep.subr.mxu0 %v220
    %v222 = vand.u32 %v50, 4294901760
    %v223 = vsub.f32 %v50, %v222
    %v224 = vand.u32 %v223, 4294901760
    %v225 = vsub.f32 %v223, %v224
    %v226 = vand.u32 %v225, 4294901760
    %227 = vmatpush1.msra.mxu0 %v226
    %v228 = vand.u32 %v53, 4294901760
    %v229 = vsub.f32 %v53, %v228
    %v230 = vand.u32 %v229, 4294901760
    %v231 = vsub.f32 %v229, %v230
    %v232 = vand.u32 %v231, 4294901760
    %233 = vmatprep.subr.mxu0 %v232
    %v234 = vand.u32 %v52, 4294901760
    %v235 = vsub.f32 %v52, %v234
    %v236 = vand.u32 %v235, 4294901760
    %v237 = vsub.f32 %v235, %v236
    %v238 = vand.u32 %v237, 4294901760
    %239 = vmatpush1.msra.mxu0 %v238
    %v240 = vand.u32 %v55, 4294901760
    %v241 = vsub.f32 %v55, %v240
    %v242 = vand.u32 %v241, 4294901760
    %v243 = vsub.f32 %v241, %v242
    %v244 = vand.u32 %v243, 4294901760
    %245 = vmatprep.subr.mxu0 %v244
    %v246 = vand.u32 %v54, 4294901760
    %v247 = vsub.f32 %v54, %v246
    %v248 = vand.u32 %v247, 4294901760
    %v249 = vsub.f32 %v247, %v248
    %v250 = vand.u32 %v249, 4294901760
    %251 = vmatpush1.msra.mxu0 %v250
    %v252 = vand.u32 %v57, 4294901760
    %v253 = vsub.f32 %v57, %v252
    %v254 = vand.u32 %v253, 4294901760
    %v255 = vsub.f32 %v253, %v254
    %v256 = vand.u32 %v255, 4294901760
    %257 = vmatprep.subr.mxu0 %v256
    %v258 = vand.u32 %v56, 4294901760
    %v259 = vsub.f32 %v56, %v258
    %v260 = vand.u32 %v259, 4294901760
    %v261 = vsub.f32 %v259, %v260
    %v262 = vand.u32 %v261, 4294901760
    %263 = vmatpush1.msra.mxu0 %v262
    %264 = vmatprep.subr.mxu0 0.0
    %265 = vmatpush1.msra.mxu0 0.0
    %266 = vmatprep.subr.mxu0 0.0
    %267 = vmatpush1.msra.mxu0 0.0
    %268 = vmatprep.subr.mxu0 0.0
    %269 = vmatpush1.msra.mxu0 0.0
    %270 = vmatprep.subr.mxu0 0.0
    %271 = vmatpush1.msra.mxu0 0.0
    %272 = vmatprep.subr.mxu0 0.0
    %273 = vmatpush1.msra.mxu0 0.0
    %274 = vmatprep.subr.mxu0 0.0
    %275 = vmatpush1.msra.mxu0 0.0
    %276 = vmatprep.subr.mxu0 0.0
    %277 = vmatpush1.msra.mxu0 0.0
    %278 = vmatprep.subr.mxu0 0.0
    %279 = vmatpush1.msra.mxu0 0.0
    %280 = vmatprep.subr.mxu0 0.0
    %281 = vmatpush1.msra.mxu0 0.0
    %282 = vmatprep.subr.mxu0 0.0
    %283 = vmatpush1.msra.mxu0 0.0
    %284 = vmatprep.subr.mxu0 0.0
    %285 = vmatpush1.msra.mxu0 0.0
    %286 = vmatprep.subr.mxu0 0.0
    %287 = vmatpush1.msra.mxu0 0.0
    %288 = vmatprep.subr.mxu0 0.0
    %289 = vmatpush1.msra.mxu0 0.0
    %290 = vmatprep.subr.mxu0 0.0
    %291 = vmatpush1.msra.mxu0 0.0
    %292 = vmatprep.subr.mxu0 0.0
    %293 = vmatpush1.msra.mxu0 0.0
    %294 = vmatprep.subr.mxu0 0.0
    %295 = vmatpush1.msra.mxu0 0.0
    %296 = vmatprep.subr.mxu0 0.0
    %297 = vmatpush1.msra.mxu0 0.0
    %298 = vmatprep.subr.mxu0 0.0
    %299 = vmatpush1.msra.mxu0 0.0
    %300 = vmatprep.subr.mxu0 0.0
    %301 = vmatpush1.msra.mxu0 0.0
    %302 = vmatprep.subr.mxu0 0.0
    %303 = vmatpush1.msra.mxu0 0.0
    %304 = vmatprep.subr.mxu0 0.0
    %305 = vmatpush1.msra.mxu0 0.0
    %306 = vmatprep.subr.mxu0 0.0
    %307 = vmatpush1.msra.mxu0 0.0
    %308 = vmatprep.subr.mxu0 0.0
    %309 = vmatpush1.msra.mxu0 0.0
    %310 = vmatprep.subr.mxu0 0.0
    %311 = vmatpush1.msra.mxu0 0.0
    %312 = vmatprep.mubr.f32.mxu0 0.0
    %v313 = vand.u32 %v60, 4294901760
    %314 = vmatmul.mubr.f32.gmra.mrb[0].mxu0 %v313
    %v315 = vpop.f32.mrb[0].mxu0
    %v316 = vadd.f32 %v153, %v315
    %v317 = vpop.f32.mrb[0].mxu0
    %v318 = vadd.f32 %v155, %v317
    %319 = vmatprep.mubr.f32.mxu0 0.0
    %v320 = vand.u32 %v63, 4294901760
    %321 = vmatmul.mubr.f32.gmra.mrb[0].mxu0 %v320
    %v322 = vpop.f32.mrb[0].mxu0
    %v323 = vadd.f32 %v164, %v322
    %v324 = vpop.f32.mrb[0].mxu0
    %v325 = vadd.f32 %v166, %v324
    %326 = vdwg.mxu0
    %v327 = vand.u32 %v43, 4294901760
    %v328 = vsub.f32 %v43, %v327
    %329 = vmatprep.subr.mxu0 %v328
    %v330 = vand.u32 %v42, 4294901760
    %v331 = vsub.f32 %v42, %v330
    %332 = vmatpush1.msra.mxu0 %v331
    %v333 = vand.u32 %v45, 4294901760
    %v334 = vsub.f32 %v45, %v333
    %335 = vmatprep.subr.mxu0 %v334
    %v336 = vand.u32 %v44, 4294901760
    %v337 = vsub.f32 %v44, %v336
    %338 = vmatpush1.msra.mxu0 %v337
    %v339 = vand.u32 %v47, 4294901760
    %v340 = vsub.f32 %v47, %v339
    %341 = vmatprep.subr.mxu0 %v340
    %v342 = vand.u32 %v46, 4294901760
    %v343 = vsub.f32 %v46, %v342
    %344 = vmatpush1.msra.mxu0 %v343
    %v345 = vand.u32 %v49, 4294901760
    %v346 = vsub.f32 %v49, %v345
    %347 = vmatprep.subr.mxu0 %v346
    %v348 = vand.u32 %v48, 4294901760
    %v349 = vsub.f32 %v48, %v348
    %350 = vmatpush1.msra.mxu0 %v349
    %v351 = vand.u32 %v51, 4294901760
    %v352 = vsub.f32 %v51, %v351
    %353 = vmatprep.subr.mxu0 %v352
    %v354 = vand.u32 %v50, 4294901760
    %v355 = vsub.f32 %v50, %v354
    %356 = vmatpush1.msra.mxu0 %v355
    %v357 = vand.u32 %v53, 4294901760
    %v358 = vsub.f32 %v53, %v357
    %359 = vmatprep.subr.mxu0 %v358
    %v360 = vand.u32 %v52, 4294901760
    %v361 = vsub.f32 %v52, %v360
    %362 = vmatpush1.msra.mxu0 %v361
    %v363 = vand.u32 %v55, 4294901760
    %v364 = vsub.f32 %v55, %v363
    %365 = vmatprep.subr.mxu0 %v364
    %v366 = vand.u32 %v54, 4294901760
    %v367 = vsub.f32 %v54, %v366
    %368 = vmatpush1.msra.mxu0 %v367
    %v369 = vand.u32 %v57, 4294901760
    %v370 = vsub.f32 %v57, %v369
    %371 = vmatprep.subr.mxu0 %v370
    %v372 = vand.u32 %v56, 4294901760
    %v373 = vsub.f32 %v56, %v372
    %374 = vmatpush1.msra.mxu0 %v373
    %375 = vmatprep.subr.mxu0 0.0
    %376 = vmatpush1.msra.mxu0 0.0
    %377 = vmatprep.subr.mxu0 0.0
    %378 = vmatpush1.msra.mxu0 0.0
    %379 = vmatprep.subr.mxu0 0.0
    %380 = vmatpush1.msra.mxu0 0.0
    %381 = vmatprep.subr.mxu0 0.0
    %382 = vmatpush1.msra.mxu0 0.0
    %383 = vmatprep.subr.mxu0 0.0
    %384 = vmatpush1.msra.mxu0 0.0
    %385 = vmatprep.subr.mxu0 0.0
    %386 = vmatpush1.msra.mxu0 0.0
    %387 = vmatprep.subr.mxu0 0.0
    %388 = vmatpush1.msra.mxu0 0.0
    %389 = vmatprep.subr.mxu0 0.0
    %390 = vmatpush1.msra.mxu0 0.0
    %391 = vmatprep.subr.mxu0 0.0
    %392 = vmatpush1.msra.mxu0 0.0
    %393 = vmatprep.subr.mxu0 0.0
    %394 = vmatpush1.msra.mxu0 0.0
    %395 = vmatprep.subr.mxu0 0.0
    %396 = vmatpush1.msra.mxu0 0.0
    %397 = vmatprep.subr.mxu0 0.0
    %398 = vmatpush1.msra.mxu0 0.0
    %399 = vmatprep.subr.mxu0 0.0
    %400 = vmatpush1.msra.mxu0 0.0
    %401 = vmatprep.subr.mxu0 0.0
    %402 = vmatpush1.msra.mxu0 0.0
    %403 = vmatprep.subr.mxu0 0.0
    %404 = vmatpush1.msra.mxu0 0.0
    %405 = vmatprep.subr.mxu0 0.0
    %406 = vmatpush1.msra.mxu0 0.0
    %407 = vmatprep.subr.mxu0 0.0
    %408 = vmatpush1.msra.mxu0 0.0
    %409 = vmatprep.subr.mxu0 0.0
    %410 = vmatpush1.msra.mxu0 0.0
    %411 = vmatprep.subr.mxu0 0.0
    %412 = vmatpush1.msra.mxu0 0.0
    %413 = vmatprep.subr.mxu0 0.0
    %414 = vmatpush1.msra.mxu0 0.0
    %415 = vmatprep.subr.mxu0 0.0
    %416 = vmatpush1.msra.mxu0 0.0
    %417 = vmatprep.subr.mxu0 0.0
    %418 = vmatpush1.msra.mxu0 0.0
    %419 = vmatprep.subr.mxu0 0.0
    %420 = vmatpush1.msra.mxu0 0.0
    %421 = vmatprep.subr.mxu0 0.0
    %422 = vmatpush1.msra.mxu0 0.0
    %423 = vmatprep.mubr.f32.mxu0 0.0
    %v424 = vand.u32 %v60, 4294901760
    %v425 = vsub.f32 %v60, %v424
    %426 = vmatmul.mubr.f32.gmra.mrb[0].mxu0 %v425
    %v427 = vpop.f32.mrb[0].mxu0
    %v428 = vadd.f32 %v316, %v427
    %v429 = vpop.f32.mrb[0].mxu0
    %v430 = vadd.f32 %v318, %v429
    %431 = vmatprep.mubr.f32.mxu0 0.0
    %v432 = vand.u32 %v63, 4294901760
    %v433 = vsub.f32 %v63, %v432
    %434 = vmatmul.mubr.f32.gmra.mrb[0].mxu0 %v433
    %v435 = vpop.f32.mrb[0].mxu0
    %v436 = vadd.f32 %v323, %v435
    %v437 = vpop.f32.mrb[0].mxu0
    %v438 = vadd.f32 %v325, %v437
    %439 = vdwg.mxu0
    %v440 = vand.u32 %v43, 4294901760
    %441 = vmatprep.subr.mxu0 %v440
    %v442 = vand.u32 %v42, 4294901760
    %443 = vmatpush1.msra.mxu0 %v442
    %v444 = vand.u32 %v45, 4294901760
    %445 = vmatprep.subr.mxu0 %v444
    %v446 = vand.u32 %v44, 4294901760
    %447 = vmatpush1.msra.mxu0 %v446
    %v448 = vand.u32 %v47, 4294901760
    %449 = vmatprep.subr.mxu0 %v448
    %v450 = vand.u32 %v46, 4294901760
    %451 = vmatpush1.msra.mxu0 %v450
    %v452 = vand.u32 %v49, 4294901760
    %453 = vmatprep.subr.mxu0 %v452
    %v454 = vand.u32 %v48, 4294901760
    %455 = vmatpush1.msra.mxu0 %v454
    %v456 = vand.u32 %v51, 4294901760
    %457 = vmatprep.subr.mxu0 %v456
    %v458 = vand.u32 %v50, 4294901760
    %459 = vmatpush1.msra.mxu0 %v458
    %v460 = vand.u32 %v53, 4294901760
    %461 = vmatprep.subr.mxu0 %v460
    %v462 = vand.u32 %v52, 4294901760
    %463 = vmatpush1.msra.mxu0 %v462
    %v464 = vand.u32 %v55, 4294901760
    %465 = vmatprep.subr.mxu0 %v464
    %v466 = vand.u32 %v54, 4294901760
    %467 = vmatpush1.msra.mxu0 %v466
    %v468 = vand.u32 %v57, 4294901760
    %469 = vmatprep.subr.mxu0 %v468
    %v470 = vand.u32 %v56, 4294901760
    %471 = vmatpush1.msra.mxu0 %v470
    %472 = vmatprep.subr.mxu0 0.0
    %473 = vmatpush1.msra.mxu0 0.0
    %474 = vmatprep.subr.mxu0 0.0
    %475 = vmatpush1.msra.mxu0 0.0
    %476 = vmatprep.subr.mxu0 0.0
    %477 = vmatpush1.msra.mxu0 0.0
    %478 = vmatprep.subr.mxu0 0.0
    %479 = vmatpush1.msra.mxu0 0.0
    %480 = vmatprep.subr.mxu0 0.0
    %481 = vmatpush1.msra.mxu0 0.0
    %482 = vmatprep.subr.mxu0 0.0
    %483 = vmatpush1.msra.mxu0 0.0
    %484 = vmatprep.subr.mxu0 0.0
    %485 = vmatpush1.msra.mxu0 0.0
    %486 = vmatprep.subr.mxu0 0.0
    %487 = vmatpush1.msra.mxu0 0.0
    %488 = vmatprep.subr.mxu0 0.0
    %489 = vmatpush1.msra.mxu0 0.0
    %490 = vmatprep.subr.mxu0 0.0
    %491 = vmatpush1.msra.mxu0 0.0
    %492 = vmatprep.subr.mxu0 0.0
    %493 = vmatpush1.msra.mxu0 0.0
    %494 = vmatprep.subr.mxu0 0.0
    %495 = vmatpush1.msra.mxu0 0.0
    %496 = vmatprep.subr.mxu0 0.0
    %497 = vmatpush1.msra.mxu0 0.0
    %498 = vmatprep.subr.mxu0 0.0
    %499 = vmatpush1.msra.mxu0 0.0
    %500 = vmatprep.subr.mxu0 0.0
    %501 = vmatpush1.msra.mxu0 0.0
    %502 = vmatprep.subr.mxu0 0.0
    %503 = vmatpush1.msra.mxu0 0.0
    %504 = vmatprep.subr.mxu0 0.0
    %505 = vmatpush1.msra.mxu0 0.0
    %506 = vmatprep.subr.mxu0 0.0
    %507 = vmatpush1.msra.mxu0 0.0
    %508 = vmatprep.subr.mxu0 0.0
    %509 = vmatpush1.msra.mxu0 0.0
    %510 = vmatprep.subr.mxu0 0.0
    %511 = vmatpush1.msra.mxu0 0.0
    %512 = vmatprep.subr.mxu0 0.0
    %513 = vmatpush1.msra.mxu0 0.0
    %514 = vmatprep.subr.mxu0 0.0
    %515 = vmatpush1.msra.mxu0 0.0
    %516 = vmatprep.subr.mxu0 0.0
    %517 = vmatpush1.msra.mxu0 0.0
    %518 = vmatprep.subr.mxu0 0.0
    %519 = vmatpush1.msra.mxu0 0.0
    %520 = vmatprep.mubr.f32.mxu0 0.0
    %v521 = vand.u32 %v60, 4294901760
    %v522 = vsub.f32 %v60, %v521
    %v523 = vand.u32 %v522, 4294901760
    %524 = vmatmul.mubr.f32.gmra.mrb[0].mxu0 %v523
    %v525 = vpop.f32.mrb[0].mxu0
    %v526 = vadd.f32 %v428, %v525
    %v527 = vpop.f32.mrb[0].mxu0
    %v528 = vadd.f32 %v430, %v527
    %529 = vmatprep.mubr.f32.mxu0 0.0
    %v530 = vand.u32 %v63, 4294901760
    %v531 = vsub.f32 %v63, %v530
    %v532 = vand.u32 %v531, 4294901760
    %533 = vmatmul.mubr.f32.gmra.mrb[0].mxu0 %v532
    %v534 = vpop.f32.mrb[0].mxu0
    %v535 = vadd.f32 %v436, %v534
    %v536 = vpop.f32.mrb[0].mxu0
    %v537 = vadd.f32 %v438, %v536
    %538 = vdwg.mxu0
    %v539 = vand.u32 %v43, 4294901760
    %v540 = vsub.f32 %v43, %v539
    %v541 = vand.u32 %v540, 4294901760
    %542 = vmatprep.subr.mxu0 %v541
    %v543 = vand.u32 %v42, 4294901760
    %v544 = vsub.f32 %v42, %v543
    %v545 = vand.u32 %v544, 4294901760
    %546 = vmatpush1.msra.mxu0 %v545
    %v547 = vand.u32 %v45, 4294901760
    %v548 = vsub.f32 %v45, %v547
    %v549 = vand.u32 %v548, 4294901760
    %550 = vmatprep.subr.mxu0 %v549
    %v551 = vand.u32 %v44, 4294901760
    %v552 = vsub.f32 %v44, %v551
    %v553 = vand.u32 %v552, 4294901760
    %554 = vmatpush1.msra.mxu0 %v553
    %v555 = vand.u32 %v47, 4294901760
    %v556 = vsub.f32 %v47, %v555
    %v557 = vand.u32 %v556, 4294901760
    %558 = vmatprep.subr.mxu0 %v557
    %v559 = vand.u32 %v46, 4294901760
    %v560 = vsub.f32 %v46, %v559
    %v561 = vand.u32 %v560, 4294901760
    %562 = vmatpush1.msra.mxu0 %v561
    %v563 = vand.u32 %v49, 4294901760
    %v564 = vsub.f32 %v49, %v563
    %v565 = vand.u32 %v564, 4294901760
    %566 = vmatprep.subr.mxu0 %v565
    %v567 = vand.u32 %v48, 4294901760
    %v568 = vsub.f32 %v48, %v567
    %v569 = vand.u32 %v568, 4294901760
    %570 = vmatpush1.msra.mxu0 %v569
    %v571 = vand.u32 %v51, 4294901760
    %v572 = vsub.f32 %v51, %v571
    %v573 = vand.u32 %v572, 4294901760
    %574 = vmatprep.subr.mxu0 %v573
    %v575 = vand.u32 %v50, 4294901760
    %v576 = vsub.f32 %v50, %v575
    %v577 = vand.u32 %v576, 4294901760
    %578 = vmatpush1.msra.mxu0 %v577
    %v579 = vand.u32 %v53, 4294901760
    %v580 = vsub.f32 %v53, %v579
    %v581 = vand.u32 %v580, 4294901760
    %582 = vmatprep.subr.mxu0 %v581
    %v583 = vand.u32 %v52, 4294901760
    %v584 = vsub.f32 %v52, %v583
    %v585 = vand.u32 %v584, 4294901760
    %586 = vmatpush1.msra.mxu0 %v585
    %v587 = vand.u32 %v55, 4294901760
    %v588 = vsub.f32 %v55, %v587
    %v589 = vand.u32 %v588, 4294901760
    %590 = vmatprep.subr.mxu0 %v589
    %v591 = vand.u32 %v54, 4294901760
    %v592 = vsub.f32 %v54, %v591
    %v593 = vand.u32 %v592, 4294901760
    %594 = vmatpush1.msra.mxu0 %v593
    %v595 = vand.u32 %v57, 4294901760
    %v596 = vsub.f32 %v57, %v595
    %v597 = vand.u32 %v596, 4294901760
    %598 = vmatprep.subr.mxu0 %v597
    %v599 = vand.u32 %v56, 4294901760
    %v600 = vsub.f32 %v56, %v599
    %v601 = vand.u32 %v600, 4294901760
    %602 = vmatpush1.msra.mxu0 %v601
    %603 = vmatprep.subr.mxu0 0.0
    %604 = vmatpush1.msra.mxu0 0.0
    %605 = vmatprep.subr.mxu0 0.0
    %606 = vmatpush1.msra.mxu0 0.0
    %607 = vmatprep.subr.mxu0 0.0
    %608 = vmatpush1.msra.mxu0 0.0
    %609 = vmatprep.subr.mxu0 0.0
    %610 = vmatpush1.msra.mxu0 0.0
    %611 = vmatprep.subr.mxu0 0.0
    %612 = vmatpush1.msra.mxu0 0.0
    %613 = vmatprep.subr.mxu0 0.0
    %614 = vmatpush1.msra.mxu0 0.0
    %615 = vmatprep.subr.mxu0 0.0
    %616 = vmatpush1.msra.mxu0 0.0
    %617 = vmatprep.subr.mxu0 0.0
    %618 = vmatpush1.msra.mxu0 0.0
    %619 = vmatprep.subr.mxu0 0.0
    %620 = vmatpush1.msra.mxu0 0.0
    %621 = vmatprep.subr.mxu0 0.0
    %622 = vmatpush1.msra.mxu0 0.0
    %623 = vmatprep.subr.mxu0 0.0
    %624 = vmatpush1.msra.mxu0 0.0
    %625 = vmatprep.subr.mxu0 0.0
    %626 = vmatpush1.msra.mxu0 0.0
    %627 = vmatprep.subr.mxu0 0.0
    %628 = vmatpush1.msra.mxu0 0.0
    %629 = vmatprep.subr.mxu0 0.0
    %630 = vmatpush1.msra.mxu0 0.0
    %631 = vmatprep.subr.mxu0 0.0
    %632 = vmatpush1.msra.mxu0 0.0
    %633 = vmatprep.subr.mxu0 0.0
    %634 = vmatpush1.msra.mxu0 0.0
    %635 = vmatprep.subr.mxu0 0.0
    %636 = vmatpush1.msra.mxu0 0.0
    %637 = vmatprep.subr.mxu0 0.0
    %638 = vmatpush1.msra.mxu0 0.0
    %639 = vmatprep.subr.mxu0 0.0
    %640 = vmatpush1.msra.mxu0 0.0
    %641 = vmatprep.subr.mxu0 0.0
    %642 = vmatpush1.msra.mxu0 0.0
    %643 = vmatprep.subr.mxu0 0.0
    %644 = vmatpush1.msra.mxu0 0.0
    %645 = vmatprep.subr.mxu0 0.0
    %646 = vmatpush1.msra.mxu0 0.0
    %647 = vmatprep.subr.mxu0 0.0
    %648 = vmatpush1.msra.mxu0 0.0
    %649 = vmatprep.subr.mxu0 0.0
    %650 = vmatpush1.msra.mxu0 0.0
    %651 = vmatprep.mubr.f32.mxu0 0.0
    %v652 = vand.u32 %v60, 4294901760
    %653 = vmatmul.mubr.f32.gmra.mrb[0].mxu0 %v652
    %v654 = vpop.f32.mrb[0].mxu0
    %v655 = vadd.f32 %v526, %v654
    %v656 = vpop.f32.mrb[0].mxu0
    %v657 = vadd.f32 %v528, %v656
    %658 = vmatprep.mubr.f32.mxu0 0.0
    %v659 = vand.u32 %v63, 4294901760
    %660 = vmatmul.mubr.f32.gmra.mrb[0].mxu0 %v659
    %v661 = vpop.f32.mrb[0].mxu0
    %v662 = vadd.f32 %v535, %v661
    %v663 = vpop.f32.mrb[0].mxu0
    %v664 = vadd.f32 %v537, %v663
    %665 = vdwg.mxu0
    %v666 = vand.u32 %v43, 4294901760
    %667 = vmatprep.subr.mxu0 %v666
    %v668 = vand.u32 %v42, 4294901760
    %669 = vmatpush1.msra.mxu0 %v668
    %v670 = vand.u32 %v45, 4294901760
    %671 = vmatprep.subr.mxu0 %v670
    %v672 = vand.u32 %v44, 4294901760
    %673 = vmatpush1.msra.mxu0 %v672
    %v674 = vand.u32 %v47, 4294901760
    %675 = vmatprep.subr.mxu0 %v674
    %v676 = vand.u32 %v46, 4294901760
    %677 = vmatpush1.msra.mxu0 %v676
    %v678 = vand.u32 %v49, 4294901760
    %679 = vmatprep.subr.mxu0 %v678
    %v680 = vand.u32 %v48, 4294901760
    %681 = vmatpush1.msra.mxu0 %v680
    %v682 = vand.u32 %v51, 4294901760
    %683 = vmatprep.subr.mxu0 %v682
    %v684 = vand.u32 %v50, 4294901760
    %685 = vmatpush1.msra.mxu0 %v684
    %v686 = vand.u32 %v53, 4294901760
    %687 = vmatprep.subr.mxu0 %v686
    %v688 = vand.u32 %v52, 4294901760
    %689 = vmatpush1.msra.mxu0 %v688
    %v690 = vand.u32 %v55, 4294901760
    %691 = vmatprep.subr.mxu0 %v690
    %v692 = vand.u32 %v54, 4294901760
    %693 = vmatpush1.msra.mxu0 %v692
    %v694 = vand.u32 %v57, 4294901760
    %695 = vmatprep.subr.mxu0 %v694
    %v696 = vand.u32 %v56, 4294901760
    %697 = vmatpush1.msra.mxu0 %v696
    %698 = vmatprep.subr.mxu0 0.0
    %699 = vmatpush1.msra.mxu0 0.0
    %700 = vmatprep.subr.mxu0 0.0
    %701 = vmatpush1.msra.mxu0 0.0
    %702 = vmatprep.subr.mxu0 0.0
    %703 = vmatpush1.msra.mxu0 0.0
    %704 = vmatprep.subr.mxu0 0.0
    %705 = vmatpush1.msra.mxu0 0.0
    %706 = vmatprep.subr.mxu0 0.0
    %707 = vmatpush1.msra.mxu0 0.0
    %708 = vmatprep.subr.mxu0 0.0
    %709 = vmatpush1.msra.mxu0 0.0
    %710 = vmatprep.subr.mxu0 0.0
    %711 = vmatpush1.msra.mxu0 0.0
    %712 = vmatprep.subr.mxu0 0.0
    %713 = vmatpush1.msra.mxu0 0.0
    %714 = vmatprep.subr.mxu0 0.0
    %715 = vmatpush1.msra.mxu0 0.0
    %716 = vmatprep.subr.mxu0 0.0
    %717 = vmatpush1.msra.mxu0 0.0
    %718 = vmatprep.subr.mxu0 0.0
    %719 = vmatpush1.msra.mxu0 0.0
    %720 = vmatprep.subr.mxu0 0.0
    %721 = vmatpush1.msra.mxu0 0.0
    %722 = vmatprep.subr.mxu0 0.0
    %723 = vmatpush1.msra.mxu0 0.0
    %724 = vmatprep.subr.mxu0 0.0
    %725 = vmatpush1.msra.mxu0 0.0
    %726 = vmatprep.subr.mxu0 0.0
    %727 = vmatpush1.msra.mxu0 0.0
    %728 = vmatprep.subr.mxu0 0.0
    %729 = vmatpush1.msra.mxu0 0.0
    %730 = vmatprep.subr.mxu0 0.0
    %731 = vmatpush1.msra.mxu0 0.0
    %732 = vmatprep.subr.mxu0 0.0
    %733 = vmatpush1.msra.mxu0 0.0
    %734 = vmatprep.subr.mxu0 0.0
    %735 = vmatpush1.msra.mxu0 0.0
    %736 = vmatprep.subr.mxu0 0.0
    %737 = vmatpush1.msra.mxu0 0.0
    %738 = vmatprep.subr.mxu0 0.0
    %739 = vmatpush1.msra.mxu0 0.0
    %740 = vmatprep.subr.mxu0 0.0
    %741 = vmatpush1.msra.mxu0 0.0
    %742 = vmatprep.subr.mxu0 0.0
    %743 = vmatpush1.msra.mxu0 0.0
    %744 = vmatprep.subr.mxu0 0.0
    %745 = vmatpush1.msra.mxu0 0.0
    %746 = vmatprep.mubr.f32.mxu0 0.0
    %v747 = vand.u32 %v60, 4294901760
    %748 = vmatmul.mubr.f32.gmra.mrb[0].mxu0 %v747
    %v749 = vpop.f32.mrb[0].mxu0
    %v750 = vadd.f32 %v655, %v749
    %v751 = vpop.f32.mrb[0].mxu0
    %v752 = vadd.f32 %v657, %v751
    %753 = vmatprep.mubr.f32.mxu0 0.0
    %v754 = vand.u32 %v63, 4294901760
    %755 = vmatmul.mubr.f32.gmra.mrb[0].mxu0 %v754
    %v756 = vpop.f32.mrb[0].mxu0
    %v757 = vadd.f32 %v662, %v756
    %v758 = vpop.f32.mrb[0].mxu0
    %v759 = vadd.f32 %v664, %v758
    %760 = vdwg.mxu0
    %v761 = vmul.f32 %v750, %v750
    %v762 = vmul.f32 %v752, %v752
    %v763 = vmul.f32 %v757, %v757
    %v764 = vmul.f32 %v759, %v759
    %v765 = vadd.f32 %v761, %v762
    %766 = vadd.xlane.f32.xlu0 %v765
    %v767 = vpop.xlane.xlu0 %766
    %v768 = vadd.f32 %v763, %v764
    %769 = vadd.xlane.f32.xlu0 %v768
    %v770 = vpop.xlane.xlu0 %769
    %v771 = vmax.f32 %v767, 1e-24
    %v772 = vmax.f32 %v770, 1e-24
    %v773 = vrsqrt.pop %v771
    %v774 = vrsqrt.pop %v772
    %v775 = vmul.f32 %v750, %v773
    %v776 = vmul.f32 %v752, %v773
    %v777 = vmul.f32 %v757, %v774
    %v778 = vmul.f32 %v759, %v774
    %779 = vst [vmem:[#allocation5] sm:$0xff] %v775
    %780 = vst [vmem:[#allocation5 + $0x8] sm:$0xff] %v776
    %781 = vst [vmem:[#allocation5 + $0x10] sm:$0xff] %v777
    %782 = vst [vmem:[#allocation5 + $0x18] sm:$0xff] %v778
    // Predicated region
    $region14: #{tpu_custom_call.1} parent=1 // pred_check
      _
    $region15: #{tpu_custom_call.1} parent=1 // pred_check_branch
      %784 = sbr.rel (0) target = $region17
    $region16: #{tpu_custom_call.1} parent=1 // pred_region
      %s786 = ssub.s32 512, 512
      %787 = vsyncadd [#allocation4], %s786
      %s788 = sshll.u32 [#allocation5], 4
      %s789 = int_to_ptr.vmem [resolvable:$true] %s788
      %794 = dma.vmem_to_hbm [thread:$0]  %s789, 512, %s2, [#allocation4], 256, 256, 16
    $region17: #{tpu_custom_call.1} parent=1 // pred_fallthru
      _
    // Predicated region
    $region18: #{tpu_custom_call.1} parent=1 // pred_check
      _
    $region19: #{tpu_custom_call.1} parent=1 // pred_check_branch
      %796 = sbr.rel (0) target = $region21
    $region20: #{tpu_custom_call.1} parent=1 // pred_region
      %797 = dma.done [#allocation4], 512
    $region21: #{tpu_custom_call.1} parent=1 // pred_fallthru
      _
    %798 = vsyncpa [#allocation3], 1
    %799 = vsyncpa [#allocation4], 1

</llo_original>
